<compile_context>
chip_gen: v6e
topology: v6e:2x2x1
jax: 0.10.0
libtpu: 0.0.40
codegen_flags: <defaults>
</compile_context>

<pallas_src>
import math
import jax
import jax.numpy as jnp
from jax.experimental import pallas as pl
from jax.experimental.pallas import tpu as pltpu


def lstm_cell_kernel(x_ref, h_ref, cx_ref, wx_ref, wh_ref, b_ref, hy_ref, cy_ref):
    H = cy_ref.shape[-1]
    # Two accumulating MXU matmuls: bf16 operands, f32 accumulation.
    gates = jnp.dot(x_ref[...], wx_ref[...], preferred_element_type=jnp.float32)
    gates = gates + jnp.dot(h_ref[...], wh_ref[...],
                            preferred_element_type=jnp.float32)
    gates = gates + b_ref[...]

    if H % 128 == 0:
        # Gate slices are lane-aligned: pure vreg selection, no XLU extracts,
        # and hy/cy stores are unmasked full-lane vst.
        ingate     = jax.nn.sigmoid(gates[:, 0 * H:1 * H])
        forgetgate = jax.nn.sigmoid(gates[:, 1 * H:2 * H])
        cellgate   = jnp.tanh(gates[:, 2 * H:3 * H])
        outgate    = jax.nn.sigmoid(gates[:, 3 * H:4 * H])
    else:
        # Sub-vreg H: two full-width EUP passes + a lane-mask blend instead of
        # four narrow activations. Range compare (cheap VALU) instead of an
        # integer divide per lane.
        lane = jax.lax.broadcasted_iota(jnp.int32, gates.shape, 1)
        is_cell = jnp.logical_and(lane >= 2 * H, lane < 3 * H)
        act = jnp.where(is_cell, jnp.tanh(gates), jax.nn.sigmoid(gates))
        ingate     = act[:, 0 * H:1 * H]
        forgetgate = act[:, 1 * H:2 * H]
        cellgate   = act[:, 2 * H:3 * H]
        outgate    = act[:, 3 * H:4 * H]

    cy = cx_ref[...] * forgetgate + ingate * cellgate   # f32 state update
    hy = outgate * jnp.tanh(cy)
    cy_ref[...] = cy.astype(cy_ref.dtype)                # f32
    hy_ref[...] = hy.astype(hy_ref.dtype)                # bf16


def prep_lstm_params(x2h_weight, h2h_weight, x2h_bias, h2h_bias,
                     matmul_dtype=jnp.bfloat16):
    """One-time parameter prep (amortized across calls / time steps).

    x2h_weight: (4H, input), h2h_weight: (4H, H)  (PyTorch nn.Linear layout).
    Returns:
      wx: (input, 4H) matmul_dtype (pre-transposed)
      wh: (H, 4H)     matmul_dtype (pre-transposed)
      b : (1, 4H)     float32 (biases pre-summed)
    """
    wx = x2h_weight.T.astype(matmul_dtype)
    wh = h2h_weight.T.astype(matmul_dtype)
    b = (x2h_bias + h2h_bias).astype(jnp.float32).reshape(1, -1)
    return wx, wh, b


def _round_up(v, m):
    return -(-v // m) * m


def _pick_batch_tile(B, block_b):
    if B <= 32:
        return B  # single tile; block equals the full dim so no (8,128) issue
    # At least two grid points so ("parallel",) can use both v7x TensorCores;
    # keep tiles sublane-aligned (16 rows for bf16 packing).
    return min(_round_up(pl.cdiv(B, 2), 16), block_b)


def lstm_cell(x, hx, cx, wx, wh, b, *, block_b=128):
    """One LSTMCell step. Returns (hy bf16, cy f32), both of shape (B, H)."""
    B, D = x.shape
    H = hx.shape[-1]
    assert wx.shape == (D, 4 * H) and wh.shape == (H, 4 * H) and b.shape == (1, 4 * H)

    # bf16 matmul operands; cell state stays f32.
    x = x.astype(wx.dtype)
    hx = hx.astype(wh.dtype)
    cx = cx.astype(jnp.float32)

    tb = _pick_batch_tile(B, block_b)
    grid = (pl.cdiv(B, tb),)

    # Accurate VMEM footprint: streamed blocks are double-buffered by the
    # pipeline; weights/bias are grid-invariant but counted double-buffered too
    # (conservative). Plus ~3 gate-sized f32 temporaries. 25% headroom, clamped
    # to the generation's capacity (no blanket 2x hedge / 32 MiB floor).
    est = (2 * (tb * _round_up(D, 128) * 2            # x   (bf16)
                + tb * _round_up(H, 128) * 2          # hx  (bf16)
                + tb * _round_up(H, 128) * 4          # cx  (f32)
                + tb * _round_up(H, 128) * 2          # hy  (bf16)
                + tb * _round_up(H, 128) * 4)         # cy  (f32)
           + 2 * (_round_up(D, 16) * _round_up(4 * H, 128) * 2     # wx (bf16)
                  + _round_up(H, 16) * _round_up(4 * H, 128) * 2   # wh (bf16)
                  + 8 * _round_up(4 * H, 128) * 4)                 # bias (f32)
           + 3 * tb * _round_up(4 * H, 128) * 4)                   # gate temps
    try:
        vmem_cap = int(pltpu.get_tpu_info().vmem_capacity_bytes)
    except Exception:
        vmem_cap = 64 << 20  # conservative: v7x per-TC capacity
    vmem_limit = int(min(max(est + est // 4 + (1 << 20), 8 << 20), vmem_cap))

    cost = pl.CostEstimate(
        flops=2 * B * (D + H) * 4 * H,
        transcendentals=5 * B * H,
        bytes_accessed=(B * D * 2 + B * H * 2 + B * H * 4        # x, hx, cx
                        + D * 4 * H * 2 + H * 4 * H * 2 + 4 * H * 4  # wx, wh, b
                        + B * H * 2 + B * H * 4),                 # hy, cy
    )

    hy, cy = pl.pallas_call(
        lstm_cell_kernel,
        out_shape=(jax.ShapeDtypeStruct((B, H), jnp.bfloat16),   # hy
                   jax.ShapeDtypeStruct((B, H), jnp.float32)),   # cy
        grid=grid,
        in_specs=[
            pl.BlockSpec((tb, D), lambda i: (i, 0)),        # x : streamed
            pl.BlockSpec((tb, H), lambda i: (i, 0)),        # hx: streamed
            pl.BlockSpec((tb, H), lambda i: (i, 0)),        # cx: streamed
            pl.BlockSpec((D, 4 * H), lambda i: (0, 0)),     # wx: VMEM-resident
            pl.BlockSpec((H, 4 * H), lambda i: (0, 0)),     # wh: VMEM-resident
            pl.BlockSpec((1, 4 * H), lambda i: (0, 0)),     # bias: VMEM-resident
        ],
        out_specs=(
            pl.BlockSpec((tb, H), lambda i: (i, 0)),
            pl.BlockSpec((tb, H), lambda i: (i, 0)),
        ),
        compiler_params=pltpu.CompilerParams(
            dimension_semantics=("parallel",),
            vmem_limit_bytes=vmem_limit,
        ),
        cost_estimate=cost,
    )(x, hx, cx, wx, wh, b)
    return hy, cy


def lstm_cell_ref(x, hx, cx, x2h_w, h2h_w, x2h_b, h2h_b):
    """Plain-JAX f32 reference mirroring the PyTorch forward exactly."""
    gates = x @ x2h_w.T + x2h_b + hx @ h2h_w.T + h2h_b
    H = hx.shape[-1]
    i = jax.nn.sigmoid(gates[:, 0 * H:1 * H])
    f = jax.nn.sigmoid(gates[:, 1 * H:2 * H])
    g = jnp.tanh(gates[:, 2 * H:3 * H])
    o = jax.nn.sigmoid(gates[:, 3 * H:4 * H])
    cy = cx * f + i * g
    hy = o * jnp.tanh(cy)
    return hy, cy


def _run_case(batch, input_size, hidden_size, seed=0):
    key = jax.random.PRNGKey(seed)
    k_x, k_h, k_c, k_wx, k_wh, k_bx, k_bh = jax.random.split(key, 7)

    # Deterministic init mimicking reset_parameters(): uniform(-std, std).
    std = 1.0 / math.sqrt(hidden_size)
    x2h_w = jax.random.uniform(k_wx, (4 * hidden_size, input_size),
                               jnp.float32, -std, std)
    h2h_w = jax.random.uniform(k_wh, (4 * hidden_size, hidden_size),
                               jnp.float32, -std, std)
    x2h_b = jax.random.uniform(k_bx, (4 * hidden_size,), jnp.float32, -std, std)
    h2h_b = jax.random.uniform(k_bh, (4 * hidden_size,), jnp.float32, -std, std)

    x = jax.random.normal(k_x, (batch, input_size), jnp.float32)
    hx = jax.random.normal(k_h, (batch, hidden_size), jnp.float32)
    cx = jax.random.normal(k_c, (batch, hidden_size), jnp.float32)

    wx, wh, b = prep_lstm_params(x2h_w, h2h_w, x2h_b, h2h_b)
    hy, cy = jax.jit(lstm_cell)(x, hx, cx, wx, wh, b)
    jax.block_until_ready((hy, cy))

    hy_ref, cy_ref = lstm_cell_ref(x, hx, cx, x2h_w, h2h_w, x2h_b, h2h_b)
    # bf16 matmul operands + bf16 hy output => loosened tolerance vs pure f32.
    assert jnp.allclose(hy.astype(jnp.float32), hy_ref, atol=5e-2, rtol=5e-2), \
        float(jnp.max(jnp.abs(hy.astype(jnp.float32) - hy_ref)))
    assert jnp.allclose(cy, cy_ref, atol=5e-2, rtol=5e-2), \
        float(jnp.max(jnp.abs(cy - cy_ref)))


if __name__ == "__main__":
    # Main case: lane-aligned hidden (fast path), single batch tile.
    _run_case(batch=16, input_size=64, hidden_size=128)
    # H not a multiple of 128: exercises the mask-blend fallback path.
    _run_case(batch=16, input_size=64, hidden_size=96, seed=1)
    # B > 32: exercises the >=2-tile batch grid (megacore split) + partial tile.
    _run_case(batch=48, input_size=64, hidden_size=128, seed=2)
    print("KERNEL_OK")
</pallas_src>

<mosaic_0001>
module attributes {stable_mosaic.version = 11 : i64} {
  func.func @lstm_cell_kernel(%arg0: i32, %arg1: memref<16x64xbf16, #tpu.memory_space<vmem>>, %arg2: memref<16x128xbf16, #tpu.memory_space<vmem>>, %arg3: memref<16x128xf32, #tpu.memory_space<vmem>>, %arg4: memref<64x512xbf16, #tpu.memory_space<vmem>>, %arg5: memref<128x512xbf16, #tpu.memory_space<vmem>>, %arg6: memref<1x512xf32, #tpu.memory_space<vmem>>, %arg7: memref<16x128xbf16, #tpu.memory_space<vmem>>, %arg8: memref<16x128xf32, #tpu.memory_space<vmem>>) attributes {dimension_semantics = [#tpu.dimension_semantics<parallel>], iteration_bounds = array<i64: 1>, scalar_prefetch = 0 : i64, scratch_operands = 0 : i64, tpu.core_type = #tpu.core_type<tc>, window_params = [{transform_indices = @transform_0, window_bounds = array<i64: 16, 64>}, {transform_indices = @transform_1, window_bounds = array<i64: 16, 128>}, {transform_indices = @transform_2, window_bounds = array<i64: 16, 128>}, {pipeline_mode = #tpu.pipeline_mode<synchronous>, transform_indices = @transform_3, window_bounds = array<i64: 64, 512>}, {pipeline_mode = #tpu.pipeline_mode<synchronous>, transform_indices = @transform_4, window_bounds = array<i64: 128, 512>}, {pipeline_mode = #tpu.pipeline_mode<synchronous>, transform_indices = @transform_5, window_bounds = array<i64: 1, 512>}, {transform_indices = @transform_6, window_bounds = array<i64: 16, 128>}, {transform_indices = @transform_7, window_bounds = array<i64: 16, 128>}]} {
    %c0 = arith.constant 0 : index
    %c0_0 = arith.constant 0 : index
    %0 = vector.load %arg1[%c0, %c0_0] : memref<16x64xbf16, #tpu.memory_space<vmem>>, vector<16x64xbf16>
    %c0_1 = arith.constant 0 : index
    %c0_2 = arith.constant 0 : index
    %1 = vector.load %arg4[%c0_1, %c0_2] : memref<64x512xbf16, #tpu.memory_space<vmem>>, vector<64x512xbf16>
    %cst = arith.constant dense<0.000000e+00> : vector<16x512xf32>
    %2 = tpu.matmul %0, %1, %cst {dimension_numbers = #tpu.dot_dimension_numbers<[1], [0], [0], [1], [0, 0, 1, 1], [], []>} : vector<16x64xbf16>, vector<64x512xbf16>, vector<16x512xf32> -> vector<16x512xf32>
    %c0_3 = arith.constant 0 : index
    %c0_4 = arith.constant 0 : index
    %3 = vector.load %arg2[%c0_3, %c0_4] : memref<16x128xbf16, #tpu.memory_space<vmem>>, vector<16x128xbf16>
    %c0_5 = arith.constant 0 : index
    %c0_6 = arith.constant 0 : index
    %4 = vector.load %arg5[%c0_5, %c0_6] : memref<128x512xbf16, #tpu.memory_space<vmem>>, vector<128x512xbf16>
    %cst_7 = arith.constant dense<0.000000e+00> : vector<16x512xf32>
    %5 = tpu.matmul %3, %4, %cst_7 {dimension_numbers = #tpu.dot_dimension_numbers<[1], [0], [0], [1], [0, 0, 1, 1], [], []>} : vector<16x128xbf16>, vector<128x512xbf16>, vector<16x512xf32> -> vector<16x512xf32>
    %6 = arith.addf %2, %5 : vector<16x512xf32>
    %c0_8 = arith.constant 0 : index
    %c0_9 = arith.constant 0 : index
    %7 = vector.load %arg6[%c0_8, %c0_9] : memref<1x512xf32, #tpu.memory_space<vmem>>, vector<1x512xf32>
    %8 = vector.broadcast %7 : vector<1x512xf32> to vector<16x512xf32>
    %9 = arith.addf %6, %8 : vector<16x512xf32>
    %10 = vector.extract_strided_slice %9 {offsets = [0, 0], sizes = [16, 128], strides = [1, 1]} : vector<16x512xf32> to vector<16x128xf32>
    %11 = arith.negf %10 : vector<16x128xf32>
    %12 = math.exp %11 : vector<16x128xf32>
    %cst_10 = arith.constant 1.000000e+00 : f32
    %13 = vector.broadcast %cst_10 : f32 to vector<16x128xf32>
    %14 = arith.addf %13, %12 : vector<16x128xf32>
    %15 = arith.divf %13, %14 : vector<16x128xf32>
    %16 = vector.extract_strided_slice %9 {offsets = [0, 128], sizes = [16, 128], strides = [1, 1]} : vector<16x512xf32> to vector<16x128xf32>
    %17 = arith.negf %16 : vector<16x128xf32>
    %18 = math.exp %17 : vector<16x128xf32>
    %cst_11 = arith.constant 1.000000e+00 : f32
    %19 = vector.broadcast %cst_11 : f32 to vector<16x128xf32>
    %20 = arith.addf %19, %18 : vector<16x128xf32>
    %21 = arith.divf %19, %20 : vector<16x128xf32>
    %22 = vector.extract_strided_slice %9 {offsets = [0, 256], sizes = [16, 128], strides = [1, 1]} : vector<16x512xf32> to vector<16x128xf32>
    %23 = math.tanh %22 : vector<16x128xf32>
    %24 = vector.extract_strided_slice %9 {offsets = [0, 384], sizes = [16, 128], strides = [1, 1]} : vector<16x512xf32> to vector<16x128xf32>
    %25 = arith.negf %24 : vector<16x128xf32>
    %26 = math.exp %25 : vector<16x128xf32>
    %cst_12 = arith.constant 1.000000e+00 : f32
    %27 = vector.broadcast %cst_12 : f32 to vector<16x128xf32>
    %28 = arith.addf %27, %26 : vector<16x128xf32>
    %29 = arith.divf %27, %28 : vector<16x128xf32>
    %c0_13 = arith.constant 0 : index
    %c0_14 = arith.constant 0 : index
    %30 = vector.load %arg3[%c0_13, %c0_14] : memref<16x128xf32, #tpu.memory_space<vmem>>, vector<16x128xf32>
    %31 = arith.mulf %30, %21 : vector<16x128xf32>
    %32 = arith.mulf %15, %23 : vector<16x128xf32>
    %33 = arith.addf %31, %32 : vector<16x128xf32>
    %34 = math.tanh %33 : vector<16x128xf32>
    %35 = arith.mulf %29, %34 : vector<16x128xf32>
    %c0_15 = arith.constant 0 : index
    %c0_16 = arith.constant 0 : index
    %36 = vector.load %arg8[%c0_15, %c0_16] : memref<16x128xf32, #tpu.memory_space<vmem>>, vector<16x128xf32>
    tpu.vector_store %arg8[%c0_15, %c0_16], %33 {strides = array<i32>} : memref<16x128xf32, #tpu.memory_space<vmem>>, vector<16x128xf32>,
    %37 = arith.truncf %35 : vector<16x128xf32> to vector<16x128xbf16>
    %c0_17 = arith.constant 0 : index
    %c0_18 = arith.constant 0 : index
    %38 = vector.load %arg7[%c0_17, %c0_18] : memref<16x128xbf16, #tpu.memory_space<vmem>>, vector<16x128xbf16>
    tpu.vector_store %arg7[%c0_17, %c0_18], %37 {strides = array<i32>} : memref<16x128xbf16, #tpu.memory_space<vmem>>, vector<16x128xbf16>,
    return
  }
  func.func @transform_0(%arg0: i32) -> (i32, i32) {
    %c0_i32 = arith.constant 0 : i32
    %c0_i32_0 = arith.constant 0 : i32
    return %arg0, %c0_i32 : i32, i32
  }
  func.func @transform_1(%arg0: i32) -> (i32, i32) {
    %c0_i32 = arith.constant 0 : i32
    %c0_i32_0 = arith.constant 0 : i32
    return %arg0, %c0_i32 : i32, i32
  }
  func.func @transform_2(%arg0: i32) -> (i32, i32) {
    %c0_i32 = arith.constant 0 : i32
    %c0_i32_0 = arith.constant 0 : i32
    return %arg0, %c0_i32 : i32, i32
  }
  func.func @transform_3(%arg0: i32) -> (i32, i32) {
    %c0_i32 = arith.constant 0 : i32
    %c0_i32_0 = arith.constant 0 : i32
    %c0_i32_1 = arith.constant 0 : i32
    return %c0_i32, %c0_i32_0 : i32, i32
  }
  func.func @transform_4(%arg0: i32) -> (i32, i32) {
    %c0_i32 = arith.constant 0 : i32
    %c0_i32_0 = arith.constant 0 : i32
    %c0_i32_1 = arith.constant 0 : i32
    return %c0_i32, %c0_i32_0 : i32, i32
  }
  func.func @transform_5(%arg0: i32) -> (i32, i32) {
    %c0_i32 = arith.constant 0 : i32
    %c0_i32_0 = arith.constant 0 : i32
    %c0_i32_1 = arith.constant 0 : i32
    return %c0_i32, %c0_i32_0 : i32, i32
  }
  func.func @transform_6(%arg0: i32) -> (i32, i32) {
    %c0_i32 = arith.constant 0 : i32
    %c0_i32_0 = arith.constant 0 : i32
    return %arg0, %c0_i32 : i32, i32
  }
  func.func @transform_7(%arg0: i32) -> (i32, i32) {
    %c0_i32 = arith.constant 0 : i32
    %c0_i32_0 = arith.constant 0 : i32
    return %arg0, %c0_i32 : i32, i32
  }
}

</mosaic_0001>

<llo_original>
// kernel: lstm_cell.1
$region0: #{lstm_cell.1}
  #allocation0 [shape = 'u32[]', space=smem, size = 0x4, offset = 0x4, fixed_abs, tag = 'smem constant byte address 0x4 - core index']
  #allocation1 [shape = 'u32[144,128]{1,0:T(1,128)}', space=vmem, size = 0x12000, scoped, tag = 'internal scratch']
  %s0 = inlined_call_operand.vmem [shape: bf16[16,64], index: 0, kind: input, shape index: {}]
  %s1 = inlined_call_operand.vmem [shape: bf16[16,128], index: 1, kind: input, shape index: {}]
  %s2 = inlined_call_operand.vmem [shape: f32[16,128], index: 2, kind: input, shape index: {}]
  %s3 = inlined_call_operand.hbm [shape: bf16[64,512], index: 3, kind: input, shape index: {}]
  %s4 = inlined_call_operand.hbm [shape: bf16[128,512], index: 4, kind: input, shape index: {}]
  %s5 = inlined_call_operand.vmem [shape: f32[1,512], index: 5, kind: input, shape index: {}]
  %s6 = inlined_call_operand.hbm [shape: bf16[16,128], index: 6, kind: output, shape index: {0}]
  %s7 = inlined_call_operand.hbm [shape: f32[16,128], index: 7, kind: output, shape index: {1}]
  %8 = xla_tuple %s6, %s7
  %s9 = sld [smem:[#allocation0]]
  $region50: #{lstm_cell.1} parent=0
    _
  %s11 = ssub.s32 1, %s9
  %s12 = scalar_select 0, %s11, %s9
  $region1: #{lstm_cell.1} parent=0
    #allocation2 [shape = 'u8[65536]{0}', space=vmem, size = 0x10000, scoped, tag = 'input window, operand 3, single buffered']
    #allocation3 [shape = 's32[1]{0}', space=sflag, size = 0x4, scoped, tag = 'scoped memory for lstm_cell.1']
    #allocation4 [shape = 's32[1]{0}', space=sflag, size = 0x4, scoped, tag = 'scoped memory for lstm_cell.1']
    #allocation5 [shape = 'u8[131072]{0}', space=vmem, size = 0x20000, scoped, tag = 'input window, operand 4, single buffered']
    #allocation6 [shape = 's32[1]{0}', space=sflag, size = 0x4, scoped, tag = 'scoped memory for lstm_cell.1']
    #allocation7 [shape = 'u8[4096]{0}', space=vmem, size = 0x1000, scoped, tag = 'output window, operand 0, single buffered']
    #allocation8 [shape = 'u8[8192]{0}', space=vmem, size = 0x2000, scoped, tag = 'output window, operand 1, single buffered']
    #allocation9 [shape = 's32[1]{0}', space=sflag, size = 0x4, scoped, tag = 'scoped memory for lstm_cell.1']
    %13 = vsyncpa [#allocation3], 0
    %14 = vsyncpa [#allocation6], 0
    %15 = vsyncpa [#allocation4], 0
    %16 = vsyncpa [#allocation9], 0
    // Predicated region
    $region2: #{lstm_cell.1} parent=1 // pred_check
      _
    $region3: #{lstm_cell.1} parent=1 // pred_check_branch
      %18 = sbr.rel (0) target = $region5
    $region4: #{lstm_cell.1} parent=1 // pred_region
      _
    $region5: #{lstm_cell.1} parent=1 // pred_fallthru
      _
    // Predicated region
    $region6: #{lstm_cell.1} parent=1 // pred_check
      _
    $region7: #{lstm_cell.1} parent=1 // pred_check_branch
      %20 = sbr.rel (0) target = $region9
    $region8: #{lstm_cell.1} parent=1 // pred_region
      _
    $region9: #{lstm_cell.1} parent=1 // pred_fallthru
      _
    // Predicated region
    $region10: #{lstm_cell.1} parent=1 // pred_check
      _
    $region11: #{lstm_cell.1} parent=1 // pred_check_branch
      %22 = sbr.rel (0) target = $region13
    $region12: #{lstm_cell.1} parent=1 // pred_region
      _
    $region13: #{lstm_cell.1} parent=1 // pred_fallthru
      _
    // Predicated region
    $region14: #{lstm_cell.1} parent=1 // pred_check
      _
    $region15: #{lstm_cell.1} parent=1 // pred_check_branch
      %24 = sbr.rel (0) target = $region17
    $region16: #{lstm_cell.1} parent=1 // pred_region
      %s26 = ssub.s32 2048, 2048
      %27 = vsyncadd [#allocation3], %s26
      %s28 = sshll.u32 [#allocation2], 4
      %s29 = int_to_ptr.vmem [resolvable:$true] %s28
      %34 = dma.hbm_to_vmem [thread:$0]  %s3, 2048, %s29, [#allocation3], 256, 256, 16
    $region17: #{lstm_cell.1} parent=1 // pred_fallthru
      _
    // Predicated region
    $region18: #{lstm_cell.1} parent=1 // pred_check
      _
    $region19: #{lstm_cell.1} parent=1 // pred_check_branch
      %36 = sbr.rel (0) target = $region21
    $region20: #{lstm_cell.1} parent=1 // pred_region
      %s38 = ssub.s32 4096, 4096
      %39 = vsyncadd [#allocation6], %s38
      %s40 = sshll.u32 [#allocation5], 4
      %s41 = int_to_ptr.vmem [resolvable:$true] %s40
      %46 = dma.hbm_to_vmem [thread:$0]  %s4, 4096, %s41, [#allocation6], 256, 256, 16
    $region21: #{lstm_cell.1} parent=1 // pred_fallthru
      _
    // Predicated region
    $region22: #{lstm_cell.1} parent=1 // pred_check
      _
    $region23: #{lstm_cell.1} parent=1 // pred_check_branch
      %48 = sbr.rel (0) target = $region25
    $region24: #{lstm_cell.1} parent=1 // pred_region
      _
    $region25: #{lstm_cell.1} parent=1 // pred_fallthru
      _
    // Predicated region
    $region26: #{lstm_cell.1} parent=1 // pred_check
      _
    $region27: #{lstm_cell.1} parent=1 // pred_check_branch
      %50 = sbr.rel (0) target = $region29
    $region28: #{lstm_cell.1} parent=1 // pred_region
      %51 = dma.done [#allocation3], 2048
    $region29: #{lstm_cell.1} parent=1 // pred_fallthru
      _
    // Predicated region
    $region30: #{lstm_cell.1} parent=1 // pred_check
      _
    $region31: #{lstm_cell.1} parent=1 // pred_check_branch
      %53 = sbr.rel (0) target = $region33
    $region32: #{lstm_cell.1} parent=1 // pred_region
      %54 = dma.done [#allocation6], 4096
    $region33: #{lstm_cell.1} parent=1 // pred_fallthru
      _
    %v56 = vld [vmem:[%s0] sm:$0xf]
    %v57 = vld [vmem:[%s0 + $0x4] sm:$0xf]
    %v58 = vld [vmem:[#allocation2] sm:$0xff]
    %v59 = vld [vmem:[#allocation2 + $0x8] sm:$0xff]
    %v60 = vld [vmem:[#allocation2 + $0x10] sm:$0xff]
    %v61 = vld [vmem:[#allocation2 + $0x18] sm:$0xff]
    %v62 = vld [vmem:[#allocation2 + $0x20] sm:$0xff]
    %v63 = vld [vmem:[#allocation2 + $0x28] sm:$0xff]
    %v64 = vld [vmem:[#allocation2 + $0x30] sm:$0xff]
    %v65 = vld [vmem:[#allocation2 + $0x38] sm:$0xff]
    %v66 = vld [vmem:[#allocation2 + $0x40] sm:$0xff]
    %v67 = vld [vmem:[#allocation2 + $0x48] sm:$0xff]
    %v68 = vld [vmem:[#allocation2 + $0x50] sm:$0xff]
    %v69 = vld [vmem:[#allocation2 + $0x58] sm:$0xff]
    %v70 = vld [vmem:[#allocation2 + $0x60] sm:$0xff]
    %v71 = vld [vmem:[#allocation2 + $0x68] sm:$0xff]
    %v72 = vld [vmem:[#allocation2 + $0x70] sm:$0xff]
    %v73 = vld [vmem:[#allocation2 + $0x78] sm:$0xff]
    %v74 = vld [vmem:[%s1] sm:$0xf]
    %v75 = vld [vmem:[%s1 + $0x4] sm:$0xf]
    %v76 = vld [vmem:[#allocation5] sm:$0xff]
    %v77 = vld [vmem:[#allocation5 + $0x8] sm:$0xff]
    %v78 = vld [vmem:[#allocation5 + $0x10] sm:$0xff]
    %v79 = vld [vmem:[#allocation5 + $0x18] sm:$0xff]
    %v80 = vld [vmem:[#allocation5 + $0x20] sm:$0xff]
    %v81 = vld [vmem:[#allocation5 + $0x28] sm:$0xff]
    %v82 = vld [vmem:[#allocation5 + $0x30] sm:$0xff]
    %v83 = vld [vmem:[#allocation5 + $0x38] sm:$0xff]
    %v84 = vld [vmem:[#allocation5 + $0x40] sm:$0xff]
    %v85 = vld [vmem:[#allocation5 + $0x48] sm:$0xff]
    %v86 = vld [vmem:[#allocation5 + $0x50] sm:$0xff]
    %v87 = vld [vmem:[#allocation5 + $0x58] sm:$0xff]
    %v88 = vld [vmem:[#allocation5 + $0x60] sm:$0xff]
    %v89 = vld [vmem:[#allocation5 + $0x68] sm:$0xff]
    %v90 = vld [vmem:[#allocation5 + $0x70] sm:$0xff]
    %v91 = vld [vmem:[#allocation5 + $0x78] sm:$0xff]
    %v92 = vld [vmem:[#allocation5 + $0x80] sm:$0xff]
    %v93 = vld [vmem:[#allocation5 + $0x88] sm:$0xff]
    %v94 = vld [vmem:[#allocation5 + $0x90] sm:$0xff]
    %v95 = vld [vmem:[#allocation5 + $0x98] sm:$0xff]
    %v96 = vld [vmem:[#allocation5 + $0xa0] sm:$0xff]
    %v97 = vld [vmem:[#allocation5 + $0xa8] sm:$0xff]
    %v98 = vld [vmem:[#allocation5 + $0xb0] sm:$0xff]
    %v99 = vld [vmem:[#allocation5 + $0xb8] sm:$0xff]
    %v100 = vld [vmem:[#allocation5 + $0xc0] sm:$0xff]
    %v101 = vld [vmem:[#allocation5 + $0xc8] sm:$0xff]
    %v102 = vld [vmem:[#allocation5 + $0xd0] sm:$0xff]
    %v103 = vld [vmem:[#allocation5 + $0xd8] sm:$0xff]
    %v104 = vld [vmem:[#allocation5 + $0xe0] sm:$0xff]
    %v105 = vld [vmem:[#allocation5 + $0xe8] sm:$0xff]
    %v106 = vld [vmem:[#allocation5 + $0xf0] sm:$0xff]
    %v107 = vld [vmem:[#allocation5 + $0xf8] sm:$0xff]
    %v110 = vunpack.c.l.b16 %v74
    %v111 = vunpack.c.l.b16 %v75
    %v112 = vpack.c.b16 %v111, %v110
    %v146 = vunpack.c.l.b16 %v76
    %v147 = vunpack.c.h.b16 %v76
    %v148 = vunpack.c.l.b16 %v77
    %v149 = vunpack.c.h.b16 %v77
    %v150 = vunpack.c.l.b16 %v78
    %v151 = vunpack.c.h.b16 %v78
    %v152 = vunpack.c.l.b16 %v79
    %v153 = vunpack.c.h.b16 %v79
    %v154 = vunpack.c.l.b16 %v80
    %v155 = vunpack.c.h.b16 %v80
    %v156 = vunpack.c.l.b16 %v81
    %v157 = vunpack.c.h.b16 %v81
    %v158 = vunpack.c.l.b16 %v82
    %v159 = vunpack.c.h.b16 %v82
    %v160 = vunpack.c.l.b16 %v83
    %v161 = vunpack.c.h.b16 %v83
    %v162 = vunpack.c.l.b16 %v84
    %v163 = vunpack.c.h.b16 %v84
    %v164 = vunpack.c.l.b16 %v85
    %v165 = vunpack.c.h.b16 %v85
    %v166 = vunpack.c.l.b16 %v86
    %v167 = vunpack.c.h.b16 %v86
    %v168 = vunpack.c.l.b16 %v87
    %v169 = vunpack.c.h.b16 %v87
    %v170 = vunpack.c.l.b16 %v88
    %v171 = vunpack.c.h.b16 %v88
    %v172 = vunpack.c.l.b16 %v89
    %v173 = vunpack.c.h.b16 %v89
    %v174 = vunpack.c.l.b16 %v90
    %v175 = vunpack.c.h.b16 %v90
    %v176 = vunpack.c.l.b16 %v91
    %v177 = vunpack.c.h.b16 %v91
    %v178 = vunpack.c.l.b16 %v92
    %v179 = vunpack.c.h.b16 %v92
    %v180 = vunpack.c.l.b16 %v93
    %v181 = vunpack.c.h.b16 %v93
    %v182 = vunpack.c.l.b16 %v94
    %v183 = vunpack.c.h.b16 %v94
    %v184 = vunpack.c.l.b16 %v95
    %v185 = vunpack.c.h.b16 %v95
    %v186 = vunpack.c.l.b16 %v96
    %v187 = vunpack.c.h.b16 %v96
    %v188 = vunpack.c.l.b16 %v97
    %v189 = vunpack.c.h.b16 %v97
    %v190 = vunpack.c.l.b16 %v98
    %v191 = vunpack.c.h.b16 %v98
    %v192 = vunpack.c.l.b16 %v99
    %v193 = vunpack.c.h.b16 %v99
    %v194 = vunpack.c.l.b16 %v100
    %v195 = vunpack.c.h.b16 %v100
    %v196 = vunpack.c.l.b16 %v101
    %v197 = vunpack.c.h.b16 %v101
    %v198 = vunpack.c.l.b16 %v102
    %v199 = vunpack.c.h.b16 %v102
    %v200 = vunpack.c.l.b16 %v103
    %v201 = vunpack.c.h.b16 %v103
    %v202 = vunpack.c.l.b16 %v104
    %v203 = vunpack.c.h.b16 %v104
    %v204 = vunpack.c.l.b16 %v105
    %v205 = vunpack.c.h.b16 %v105
    %v206 = vunpack.c.l.b16 %v106
    %v207 = vunpack.c.h.b16 %v106
    %v208 = vunpack.c.l.b16 %v107
    %v209 = vunpack.c.h.b16 %v107
    %v210 = vpack.c.b16 %v150, %v146
    %v211 = vpack.c.b16 %v151, %v147
    %v212 = vpack.c.b16 %v152, %v148
    %v213 = vpack.c.b16 %v153, %v149
    %v214 = vpack.c.b16 %v158, %v154
    %v215 = vpack.c.b16 %v159, %v155
    %v216 = vpack.c.b16 %v160, %v156
    %v217 = vpack.c.b16 %v161, %v157
    %v218 = vpack.c.b16 %v166, %v162
    %v219 = vpack.c.b16 %v167, %v163
    %v220 = vpack.c.b16 %v168, %v164
    %v221 = vpack.c.b16 %v169, %v165
    %v222 = vpack.c.b16 %v174, %v170
    %v223 = vpack.c.b16 %v175, %v171
    %v224 = vpack.c.b16 %v176, %v172
    %v225 = vpack.c.b16 %v177, %v173
    %v226 = vpack.c.b16 %v182, %v178
    %v227 = vpack.c.b16 %v183, %v179
    %v228 = vpack.c.b16 %v184, %v180
    %v229 = vpack.c.b16 %v185, %v181
    %v230 = vpack.c.b16 %v190, %v186
    %v231 = vpack.c.b16 %v191, %v187
    %v232 = vpack.c.b16 %v192, %v188
    %v233 = vpack.c.b16 %v193, %v189
    %v234 = vpack.c.b16 %v198, %v194
    %v235 = vpack.c.b16 %v199, %v195
    %v236 = vpack.c.b16 %v200, %v196
    %v237 = vpack.c.b16 %v201, %v197
    %v238 = vpack.c.b16 %v206, %v202
    %v239 = vpack.c.b16 %v207, %v203
    %v240 = vpack.c.b16 %v208, %v204
    %v241 = vpack.c.b16 %v209, %v205
    %274 = vmatprep.subr.bf16.mxu0 %v239
    %275 = vmatpush1.bf16.msra.mxu0 %v238
    %276 = vmatprep.subr.bf16.mxu0 %v235
    %277 = vmatpush1.bf16.msra.mxu0 %v234
    %278 = vmatprep.subr.bf16.mxu0 %v231
    %279 = vmatpush1.bf16.msra.mxu0 %v230
    %280 = vmatprep.subr.bf16.mxu0 %v227
    %281 = vmatpush1.bf16.msra.mxu0 %v226
    %282 = vmatprep.subr.bf16.mxu0 %v223
    %283 = vmatpush1.bf16.msra.mxu0 %v222
    %284 = vmatprep.subr.bf16.mxu0 %v219
    %285 = vmatpush1.bf16.msra.mxu0 %v218
    %286 = vmatprep.subr.bf16.mxu0 %v215
    %287 = vmatpush1.bf16.msra.mxu0 %v214
    %288 = vmatprep.subr.bf16.mxu0 %v211
    %289 = vmatpush1.bf16.msra.mxu0 %v210
    %290 = vmatprep.subr.bf16.mxu0 0
    %291 = vmatpush2.bf16.msra.mxu0 0
    %292 = vmatprep.subr.bf16.mxu0 0
    %293 = vmatpush2.bf16.msra.mxu0 0
    %294 = vmatprep.subr.bf16.mxu0 0
    %295 = vmatpush2.bf16.msra.mxu0 0
    %296 = vmatprep.subr.bf16.mxu0 0
    %297 = vmatpush2.bf16.msra.mxu0 0
    %298 = vmatprep.subr.bf16.mxu0 0
    %299 = vmatpush2.bf16.msra.mxu0 0
    %300 = vmatprep.subr.bf16.mxu0 0
    %301 = vmatpush2.bf16.msra.mxu0 0
    %302 = vmatprep.subr.bf16.mxu0 0
    %303 = vmatpush2.bf16.msra.mxu0 0
    %304 = vmatprep.subr.bf16.mxu0 0
    %305 = vmatpush2.bf16.msra.mxu0 0
    %306 = vmatprep.mubr.bf16.mxu0 0
    %307 = vmatmul.mubr.bf16.gmra.mxu0 %v112
    %v308 = vpop.f32.mrf.mxu0
    %v309 = vadd.f32 0.0, %v308
    %v310 = vpop.f32.mrf.mxu0
    %v311 = vadd.f32 0.0, %v310
    %v312 = vpop.f32.mrf.mxu0
    %v313 = vadd.f32 0.0, %v312
    %v314 = vpop.f32.mrf.mxu0
    %v315 = vadd.f32 0.0, %v314
    %316 = vdwg.mxu0
    %317 = vmatprep.subr.bf16.mxu0 %v241
    %318 = vmatpush1.bf16.msra.mxu0 %v240
    %319 = vmatprep.subr.bf16.mxu0 %v237
    %320 = vmatpush1.bf16.msra.mxu0 %v236
    %321 = vmatprep.subr.bf16.mxu0 %v233
    %322 = vmatpush1.bf16.msra.mxu0 %v232
    %323 = vmatprep.subr.bf16.mxu0 %v229
    %324 = vmatpush1.bf16.msra.mxu0 %v228
    %325 = vmatprep.subr.bf16.mxu0 %v225
    %326 = vmatpush1.bf16.msra.mxu0 %v224
    %327 = vmatprep.subr.bf16.mxu0 %v221
    %328 = vmatpush1.bf16.msra.mxu0 %v220
    %329 = vmatprep.subr.bf16.mxu0 %v217
    %330 = vmatpush1.bf16.msra.mxu0 %v216
    %331 = vmatprep.subr.bf16.mxu0 %v213
    %332 = vmatpush1.bf16.msra.mxu0 %v212
    %333 = vmatprep.subr.bf16.mxu0 0
    %334 = vmatpush2.bf16.msra.mxu0 0
    %335 = vmatprep.subr.bf16.mxu0 0
    %336 = vmatpush2.bf16.msra.mxu0 0
    %337 = vmatprep.subr.bf16.mxu0 0
    %338 = vmatpush2.bf16.msra.mxu0 0
    %339 = vmatprep.subr.bf16.mxu0 0
    %340 = vmatpush2.bf16.msra.mxu0 0
    %341 = vmatprep.subr.bf16.mxu0 0
    %342 = vmatpush2.bf16.msra.mxu0 0
    %343 = vmatprep.subr.bf16.mxu0 0
    %344 = vmatpush2.bf16.msra.mxu0 0
    %345 = vmatprep.subr.bf16.mxu0 0
    %346 = vmatpush2.bf16.msra.mxu0 0
    %347 = vmatprep.subr.bf16.mxu0 0
    %348 = vmatpush2.bf16.msra.mxu0 0
    %349 = vmatprep.mubr.bf16.mxu0 0
    %350 = vmatmul.mubr.bf16.gmra.mxu0 %v112
    %v351 = vpop.f32.mrf.mxu0
    %v352 = vadd.f32 0.0, %v351
    %v353 = vpop.f32.mrf.mxu0
    %v354 = vadd.f32 0.0, %v353
    %v355 = vpop.f32.mrf.mxu0
    %v356 = vadd.f32 0.0, %v355
    %v357 = vpop.f32.mrf.mxu0
    %v358 = vadd.f32 0.0, %v357
    %359 = vdwg.mxu0
    %v362 = vunpack.c.l.b16 %v56
    %v363 = vunpack.c.l.b16 %v57
    %v364 = vpack.c.b16 %v363, %v362
    %v381 = vunpack.c.l.b16 %v58
    %v382 = vunpack.c.h.b16 %v58
    %v383 = vunpack.c.l.b16 %v59
    %v384 = vunpack.c.h.b16 %v59
    %v385 = vunpack.c.l.b16 %v60
    %v386 = vunpack.c.h.b16 %v60
    %v387 = vunpack.c.l.b16 %v61
    %v388 = vunpack.c.h.b16 %v61
    %v389 = vunpack.c.l.b16 %v62
    %v390 = vunpack.c.h.b16 %v62
    %v391 = vunpack.c.l.b16 %v63
    %v392 = vunpack.c.h.b16 %v63
    %v393 = vunpack.c.l.b16 %v64
    %v394 = vunpack.c.h.b16 %v64
    %v395 = vunpack.c.l.b16 %v65
    %v396 = vunpack.c.h.b16 %v65
    %v397 = vunpack.c.l.b16 %v66
    %v398 = vunpack.c.h.b16 %v66
    %v399 = vunpack.c.l.b16 %v67
    %v400 = vunpack.c.h.b16 %v67
    %v401 = vunpack.c.l.b16 %v68
    %v402 = vunpack.c.h.b16 %v68
    %v403 = vunpack.c.l.b16 %v69
    %v404 = vunpack.c.h.b16 %v69
    %v405 = vunpack.c.l.b16 %v70
    %v406 = vunpack.c.h.b16 %v70
    %v407 = vunpack.c.l.b16 %v71
    %v408 = vunpack.c.h.b16 %v71
    %v409 = vunpack.c.l.b16 %v72
    %v410 = vunpack.c.h.b16 %v72
    %v411 = vunpack.c.l.b16 %v73
    %v412 = vunpack.c.h.b16 %v73
    %v413 = vpack.c.b16 %v385, %v381
    %v414 = vpack.c.b16 %v386, %v382
    %v415 = vpack.c.b16 %v387, %v383
    %v416 = vpack.c.b16 %v388, %v384
    %v417 = vpack.c.b16 %v393, %v389
    %v418 = vpack.c.b16 %v394, %v390
    %v419 = vpack.c.b16 %v395, %v391
    %v420 = vpack.c.b16 %v396, %v392
    %v421 = vpack.c.b16 %v401, %v397
    %v422 = vpack.c.b16 %v402, %v398
    %v423 = vpack.c.b16 %v403, %v399
    %v424 = vpack.c.b16 %v404, %v400
    %v425 = vpack.c.b16 %v409, %v405
    %v426 = vpack.c.b16 %v410, %v406
    %v427 = vpack.c.b16 %v411, %v407
    %v428 = vpack.c.b16 %v412, %v408
    %vm445 = vcmask 523264
    %v447 = vsel %vm445, %v364, 0
    %449 = vmatprep.subr.bf16.mxu0 0
    %450 = vmatpush1.bf16.msra.mxu0 0
    %451 = vmatprep.subr.bf16.mxu0 0
    %452 = vmatpush1.bf16.msra.mxu0 0
    %453 = vmatprep.subr.bf16.mxu0 0
    %454 = vmatpush1.bf16.msra.mxu0 0
    %455 = vmatprep.subr.bf16.mxu0 0
    %456 = vmatpush1.bf16.msra.mxu0 0
    %457 = vmatprep.subr.bf16.mxu0 %v426
    %458 = vmatpush1.bf16.msra.mxu0 %v425
    %459 = vmatprep.subr.bf16.mxu0 %v422
    %460 = vmatpush1.bf16.msra.mxu0 %v421
    %461 = vmatprep.subr.bf16.mxu0 %v418
    %462 = vmatpush1.bf16.msra.mxu0 %v417
    %463 = vmatprep.subr.bf16.mxu0 %v414
    %464 = vmatpush1.bf16.msra.mxu0 %v413
    %465 = vmatprep.subr.bf16.mxu0 0
    %466 = vmatpush2.bf16.msra.mxu0 0
    %467 = vmatprep.subr.bf16.mxu0 0
    %468 = vmatpush2.bf16.msra.mxu0 0
    %469 = vmatprep.subr.bf16.mxu0 0
    %470 = vmatpush2.bf16.msra.mxu0 0
    %471 = vmatprep.subr.bf16.mxu0 0
    %472 = vmatpush2.bf16.msra.mxu0 0
    %473 = vmatprep.subr.bf16.mxu0 0
    %474 = vmatpush2.bf16.msra.mxu0 0
    %475 = vmatprep.subr.bf16.mxu0 0
    %476 = vmatpush2.bf16.msra.mxu0 0
    %477 = vmatprep.subr.bf16.mxu0 0
    %478 = vmatpush2.bf16.msra.mxu0 0
    %479 = vmatprep.subr.bf16.mxu0 0
    %480 = vmatpush2.bf16.msra.mxu0 0
    %481 = vmatprep.mubr.bf16.mxu0 0
    %482 = vmatmul.mubr.bf16.gmra.mxu0 %v447
    %v483 = vpop.f32.mrf.mxu0
    %v484 = vadd.f32 %v309, %v483
    %v485 = vpop.f32.mrf.mxu0
    %v486 = vadd.f32 %v311, %v485
    %v487 = vpop.f32.mrf.mxu0
    %v488 = vadd.f32 %v313, %v487
    %v489 = vpop.f32.mrf.mxu0
    %v490 = vadd.f32 %v315, %v489
    %491 = vdwg.mxu0
    %492 = vmatprep.subr.bf16.mxu0 0
    %493 = vmatpush1.bf16.msra.mxu0 0
    %494 = vmatprep.subr.bf16.mxu0 0
    %495 = vmatpush1.bf16.msra.mxu0 0
    %496 = vmatprep.subr.bf16.mxu0 0
    %497 = vmatpush1.bf16.msra.mxu0 0
    %498 = vmatprep.subr.bf16.mxu0 0
    %499 = vmatpush1.bf16.msra.mxu0 0
    %500 = vmatprep.subr.bf16.mxu0 %v428
    %501 = vmatpush1.bf16.msra.mxu0 %v427
    %502 = vmatprep.subr.bf16.mxu0 %v424
    %503 = vmatpush1.bf16.msra.mxu0 %v423
    %504 = vmatprep.subr.bf16.mxu0 %v420
    %505 = vmatpush1.bf16.msra.mxu0 %v419
    %506 = vmatprep.subr.bf16.mxu0 %v416
    %507 = vmatpush1.bf16.msra.mxu0 %v415
    %508 = vmatprep.subr.bf16.mxu0 0
    %509 = vmatpush2.bf16.msra.mxu0 0
    %510 = vmatprep.subr.bf16.mxu0 0
    %511 = vmatpush2.bf16.msra.mxu0 0
    %512 = vmatprep.subr.bf16.mxu0 0
    %513 = vmatpush2.bf16.msra.mxu0 0
    %514 = vmatprep.subr.bf16.mxu0 0
    %515 = vmatpush2.bf16.msra.mxu0 0
    %516 = vmatprep.subr.bf16.mxu0 0
    %517 = vmatpush2.bf16.msra.mxu0 0
    %518 = vmatprep.subr.bf16.mxu0 0
    %519 = vmatpush2.bf16.msra.mxu0 0
    %520 = vmatprep.subr.bf16.mxu0 0
    %521 = vmatpush2.bf16.msra.mxu0 0
    %522 = vmatprep.subr.bf16.mxu0 0
    %523 = vmatpush2.bf16.msra.mxu0 0
    %524 = vmatprep.mubr.bf16.mxu0 0
    %525 = vmatmul.mubr.bf16.gmra.mxu0 %v447
    %v526 = vpop.f32.mrf.mxu0
    %v527 = vadd.f32 %v352, %v526
    %v528 = vpop.f32.mrf.mxu0
    %v529 = vadd.f32 %v354, %v528
    %v530 = vpop.f32.mrf.mxu0
    %v531 = vadd.f32 %v356, %v530
    %v532 = vpop.f32.mrf.mxu0
    %v533 = vadd.f32 %v358, %v532
    %534 = vdwg.mxu0
    %v535 = vld [vmem:[%s5] sm:$0xf]
    %v537 = vlaneseq
    %v538 = vshrl.u32 %v537, 7
    %v539 = vsub.s32 0, %v538
    %v540 = vrot.slane %v535, %v539
    %v541 = vlaneseq
    %v542 = vshrl.u32 %v541, 7
    %v543 = vsub.s32 1, %v542
    %v544 = vrot.slane %v535, %v543
    %v545 = vlaneseq
    %v546 = vshrl.u32 %v545, 7
    %v547 = vsub.s32 2, %v546
    %v548 = vrot.slane %v535, %v547
    %v549 = vlaneseq
    %v550 = vshrl.u32 %v549, 7
    %v551 = vsub.s32 3, %v550
    %v552 = vrot.slane %v535, %v551
    %v557 = vadd.f32 %v484, %v540
    %v558 = vadd.f32 %v486, %v544
    %v559 = vadd.f32 %v527, %v548
    %v560 = vadd.f32 %v529, %v552
    %v561 = vadd.f32 %v488, %v540
    %v562 = vadd.f32 %v490, %v544
    %v563 = vadd.f32 %v531, %v548
    %v564 = vadd.f32 %v533, %v552
    %v565 = vxor.u32 %v557, 2147483648
    %v566 = vxor.u32 %v561, 2147483648
    %v567 = vmul.f32 %v565, 1.442695
    %v568 = vpow.pop %v567
    %v569 = vmul.f32 %v566, 1.442695
    %v570 = vpow.pop %v569
    %v571 = vadd.f32 %v568, 1.0
    %v572 = vadd.f32 %v570, 1.0
    %v573 = vrcp.pop %v571
    %v574 = vmul.f32 1.0, %v573
    %v575 = vrcp.pop %v572
    %v576 = vmul.f32 1.0, %v575
    %v577 = vxor.u32 %v558, 2147483648
    %v578 = vxor.u32 %v562, 2147483648
    %v579 = vmul.f32 %v577, 1.442695
    %v580 = vpow.pop %v579
    %v581 = vmul.f32 %v578, 1.442695
    %v582 = vpow.pop %v581
    %v583 = vadd.f32 %v580, 1.0
    %v584 = vadd.f32 %v582, 1.0
    %v585 = vrcp.pop %v583
    %v586 = vmul.f32 1.0, %v585
    %v587 = vrcp.pop %v584
    %v588 = vmul.f32 1.0, %v587
    %v589 = vtanh.pop %v559
    %v590 = vtanh.pop %v563
    %v591 = vxor.u32 %v560, 2147483648
    %v592 = vxor.u32 %v564, 2147483648
    %v593 = vmul.f32 %v591, 1.442695
    %v594 = vpow.pop %v593
    %v595 = vmul.f32 %v592, 1.442695
    %v596 = vpow.pop %v595
    %v597 = vadd.f32 %v594, 1.0
    %v598 = vadd.f32 %v596, 1.0
    %v599 = vrcp.pop %v597
    %v600 = vmul.f32 1.0, %v599
    %v601 = vrcp.pop %v598
    %v602 = vmul.f32 1.0, %v601
    %v603 = vld [vmem:[%s2] sm:$0xff]
    %v604 = vld [vmem:[%s2 + $0x8] sm:$0xff]
    %v605 = vmul.f32 %v603, %v586
    %v606 = vmul.f32 %v604, %v588
    %v607 = vmul.f32 %v574, %v589
    %v608 = vmul.f32 %v576, %v590
    %v609 = vadd.f32 %v605, %v607
    %v610 = vadd.f32 %v606, %v608
    %v611 = vtanh.pop %v609
    %v612 = vtanh.pop %v610
    %v613 = vmul.f32 %v600, %v611
    %v614 = vmul.f32 %v602, %v612
    %615 = vst [vmem:[#allocation8] sm:$0xff] %v609
    %616 = vst [vmem:[#allocation8 + $0x8] sm:$0xff] %v610
    %v617 = vpack.c.bf16 %v614, %v613
    %v619 = vunpack.c.l.b16 %v617
    %v620 = vunpack.c.h.b16 %v617
    %v621 = vpack.c.b16 %v619, %v619
    %v622 = vpack.c.b16 %v620, %v620
    %625 = vst [vmem:[#allocation7] sm:$0xf] %v621
    %626 = vst [vmem:[#allocation7 + $0x4] sm:$0xf] %v622
    // Predicated region
    $region34: #{lstm_cell.1} parent=1 // pred_check
      _
    $region35: #{lstm_cell.1} parent=1 // pred_check_branch
      %628 = sbr.rel (0) target = $region37
    $region36: #{lstm_cell.1} parent=1 // pred_region
      %s630 = ssub.s32 128, 128
      %631 = vsyncadd [#allocation4], %s630
      %s632 = sshll.u32 [#allocation7], 4
      %s633 = int_to_ptr.vmem [resolvable:$true] %s632
      %638 = dma.vmem_to_hbm [thread:$0]  %s633, 128, %s6, [#allocation4], 64, 64, 4
    $region37: #{lstm_cell.1} parent=1 // pred_fallthru
      _
    // Predicated region
    $region38: #{lstm_cell.1} parent=1 // pred_check
      _
    $region39: #{lstm_cell.1} parent=1 // pred_check_branch
      %640 = sbr.rel (0) target = $region41
    $region40: #{lstm_cell.1} parent=1 // pred_region
      %s642 = ssub.s32 256, 256
      %643 = vsyncadd [#allocation9], %s642
      %s644 = sshll.u32 [#allocation8], 4
      %s645 = int_to_ptr.vmem [resolvable:$true] %s644
      %650 = dma.vmem_to_hbm [thread:$0]  %s645, 256, %s7, [#allocation9], 128, 128, 8
    $region41: #{lstm_cell.1} parent=1 // pred_fallthru
      _
    // Predicated region
    $region42: #{lstm_cell.1} parent=1 // pred_check
      _
    $region43: #{lstm_cell.1} parent=1 // pred_check_branch
      %652 = sbr.rel (0) target = $region45
    $region44: #{lstm_cell.1} parent=1 // pred_region
      %653 = dma.done [#allocation4], 128
    $region45: #{lstm_cell.1} parent=1 // pred_fallthru
      _
    // Predicated region
    $region46: #{lstm_cell.1} parent=1 // pred_check
      _
    $region47: #{lstm_cell.1} parent=1 // pred_check_branch
      %655 = sbr.rel (0) target = $region49
    $region48: #{lstm_cell.1} parent=1 // pred_region
      %656 = dma.done [#allocation9], 256
    $region49: #{lstm_cell.1} parent=1 // pred_fallthru
      _
    %657 = vsyncpa [#allocation3], 1
    %658 = vsyncpa [#allocation6], 1
    %659 = vsyncpa [#allocation4], 1
    %660 = vsyncpa [#allocation9], 1

</llo_original>
